<compile_context>
chip_gen: v5e
topology: v5e:2x2
jax: 0.10.0
libtpu: 0.0.40
codegen_flags: <defaults>
</compile_context>

<pallas_src>
import jax
import jax.numpy as jnp
from jax.experimental import pallas as pl
from jax.experimental.pallas import tpu as pltpu


# ----------------------------------------------------------------------------
# Kernels
# ----------------------------------------------------------------------------
def _mm_dup_small_kernel(x1_ref, x2_ref, o_ref):
    # Whole problem fits in one block: single MXU matmul with f32 accumulation,
    # cast once, then two lane-dense stores (duplication along the size-2 axis).
    m = jnp.dot(x1_ref[...], x2_ref[...], preferred_element_type=jnp.float32)
    mc = m.astype(o_ref.dtype)
    o_ref[:, 0, :] = mc
    o_ref[:, 1, :] = mc


def _mm_dup_tiled_kernel(x1_ref, x2_ref, o_ref, acc_ref):
    # Standard K-axis accumulator pattern.
    @pl.when(pl.program_id(2) == 0)
    def _():
        acc_ref[...] = jnp.zeros_like(acc_ref)

    acc_ref[...] += jnp.dot(
        x1_ref[...], x2_ref[...], preferred_element_type=jnp.float32
    )

    @pl.when(pl.program_id(2) == pl.num_programs(2) - 1)
    def _():
        # Cast once, then two explicit lane-dense (last dim = tn) stores; avoids
        # materializing a sublane-sparse (tm, 2, tn) f32 broadcast intermediate.
        mc = acc_ref[...].astype(o_ref.dtype)
        o_ref[:, 0, :] = mc
        o_ref[:, 1, :] = mc


# ----------------------------------------------------------------------------
# Helpers
# ----------------------------------------------------------------------------
def _ceil_to(x, m):
    return ((x + m - 1) // m) * m


# Scoped-VMEM budget: safe on v7x (64 MiB physical per TC) and generous on
# v5e / v6e (128 MiB physical).
_VMEM_LIMIT_BYTES = 40 * 1024 * 1024
# Problems whose whole (tile-padded) footprint is below this go to the
# no-grid single-block path (launch-latency bound regime).
_SMALL_PATH_BYTES = 2 * 1024 * 1024


# ----------------------------------------------------------------------------
# Wrapper
# ----------------------------------------------------------------------------
def mm_cat(x1, x2, *, tm=256, tn=512, tk=512, cast_to_bf16=False):
    """out = concat([x1 @ x2, x1 @ x2], axis=1)  (the valid forward path)."""
    M, K = x1.shape
    K2, N = x2.shape
    assert K == K2, "inner dimensions must match"

    out_dtype = x1.dtype
    itemsize = jnp.dtype(out_dtype).itemsize

    if cast_to_bf16 and x1.dtype == jnp.float32:
        # Halves input HBM traffic and hits the bf16 MXU rate on v6e/v7x; the
        # dot still accumulates in f32 via preferred_element_type.
        x1 = x1.astype(jnp.bfloat16)
        x2 = x2.astype(jnp.bfloat16)
    in_itemsize = jnp.dtype(x1.dtype).itemsize

    # ---- tiny single-block fast path, gated on actual padded byte sizes ----
    small_bytes = (
        _ceil_to(M, 8) * _ceil_to(K, 128) * in_itemsize        # x1 block
        + _ceil_to(K, 8) * _ceil_to(N, 128) * in_itemsize      # x2 block
        + M * 8 * _ceil_to(N, 128) * itemsize                  # (M,2,N): 2 -> 8 sublanes
        + _ceil_to(M, 8) * _ceil_to(N, 128) * 4                # f32 acc in vregs
    )
    cost_small = pl.CostEstimate(
        flops=2 * M * N * K,
        transcendentals=0,
        bytes_accessed=(M * K + K * N) * in_itemsize + 2 * M * N * itemsize,
    )
    if small_bytes <= _SMALL_PATH_BYTES:
        out = pl.pallas_call(
            _mm_dup_small_kernel,
            out_shape=jax.ShapeDtypeStruct((M, 2, N), out_dtype),
            compiler_params=pltpu.CompilerParams(
                vmem_limit_bytes=_VMEM_LIMIT_BYTES,
            ),
            cost_estimate=cost_small,
        )(x1, x2)
        return out.reshape(M, 2 * N)

    # ---- general tiled path: pad to tile multiples, never collapse tiles ----
    # Tile alignment: tm multiple of 8 (sublanes), tn/tk multiples of 128 (lanes).
    tm = min(tm, _ceil_to(M, 8))
    tn = min(tn, _ceil_to(N, 128))
    tk = min(tk, _ceil_to(K, 128))

    # Keep >= 2 parallel (i, j) blocks when possible so v7x's two TensorCores
    # both get work; prefer splitting N (lane-dense output stays wide).
    if (_ceil_to(M, tm) // tm) * (_ceil_to(N, tn) // tn) == 1 and tn >= 256:
        tn //= 2

    M_pad = _ceil_to(M, tm)
    N_pad = _ceil_to(N, tn)
    K_pad = _ceil_to(K, tk)

    if (M_pad, K_pad) != (M, K):
        x1 = jnp.pad(x1, ((0, M_pad - M), (0, K_pad - K)))
    if (K_pad, N_pad) != (K, N):
        x2 = jnp.pad(x2, ((0, K_pad - K), (0, N_pad - N)))

    grid = (M_pad // tm, N_pad // tn, K_pad // tk)

    # CostEstimate reflecting re-reads: x1 streamed N_pad//tn times, x2 streamed
    # M_pad//tm times, output written once (duplicated).
    cost = pl.CostEstimate(
        flops=2 * M_pad * N_pad * K_pad,
        transcendentals=0,
        bytes_accessed=(
            M_pad * K_pad * in_itemsize * grid[1]
            + K_pad * N_pad * in_itemsize * grid[0]
            + 2 * M_pad * N_pad * itemsize
        ),
    )

    out = pl.pallas_call(
        _mm_dup_tiled_kernel,
        out_shape=jax.ShapeDtypeStruct((M_pad, 2, N_pad), out_dtype),
        grid_spec=pltpu.PrefetchScalarGridSpec(
            num_scalar_prefetch=0,
            grid=grid,
            in_specs=[
                pl.BlockSpec((tm, tk), lambda i, j, k: (i, k)),
                pl.BlockSpec((tk, tn), lambda i, j, k: (k, j)),
            ],
            # Output block stays fixed across the K axis (accumulator pattern);
            # written once at k == last.
            out_specs=pl.BlockSpec((tm, 2, tn), lambda i, j, k: (i, 0, j)),
            scratch_shapes=[pltpu.VMEM((tm, tn), jnp.float32)],
        ),
        compiler_params=pltpu.CompilerParams(
            dimension_semantics=("parallel", "parallel", "arbitrary"),
            vmem_limit_bytes=_VMEM_LIMIT_BYTES,
        ),
        cost_estimate=cost,
    )(x1, x2)

    # Strip padding, then the row-major (M, 2, N) -> (M, 2N) reshape is a
    # zero-cost view and equals concat([v1, v1], axis=1).
    out = out[:M, :, :N]
    return out.reshape(M, 2 * N)


# ----------------------------------------------------------------------------
# Self-test
# ----------------------------------------------------------------------------
if __name__ == "__main__":
    key = jax.random.PRNGKey(0)
    k1, k2 = jax.random.split(key)
    # Same shapes as the module's example tensors: torch.randn(5, 5)
    x1 = jax.random.normal(k1, (5, 5), dtype=jnp.float32)
    x2 = jax.random.normal(k2, (5, 5), dtype=jnp.float32)

    out = mm_cat(x1, x2)
    out = jax.block_until_ready(out)

    # Reference check in plain JAX.
    v1 = jnp.dot(x1, x2, preferred_element_type=jnp.float32)
    ref = jnp.concatenate([v1, v1], axis=1)
    assert out.shape == (5, 10), out.shape
    assert jnp.allclose(out, ref, atol=1e-5, rtol=1e-5), "mismatch vs reference"

    # Exercise the tiled path with a larger, non-tile-divisible problem
    # (forces the padding path and a multi-block (i, j, k) grid).
    kb1, kb2 = jax.random.split(jax.random.PRNGKey(1))
    a = jax.random.normal(kb1, (300, 700), dtype=jnp.float32)
    b = jax.random.normal(kb2, (700, 520), dtype=jnp.float32)
    big = jax.block_until_ready(mm_cat(a, b, tm=128, tn=256, tk=256))
    vb = jnp.dot(a, b, preferred_element_type=jnp.float32)
    refb = jnp.concatenate([vb, vb], axis=1)
    assert big.shape == (300, 1040), big.shape
    assert jnp.allclose(big, refb, atol=1e-3, rtol=1e-3), "tiled path mismatch"

    print("KERNEL_OK")
</pallas_src>

<mosaic_0001>
module attributes {stable_mosaic.version = 11 : i64} {
  func.func @_mm_dup_small_kernel(%arg0: memref<5x5xf32, #tpu.memory_space<vmem>>, %arg1: memref<5x5xf32, #tpu.memory_space<vmem>>, %arg2: memref<5x2x5xf32, #tpu.memory_space<vmem>>) attributes {dimension_semantics = [], scalar_prefetch = 0 : i64, scratch_operands = 0 : i64, tpu.core_type = #tpu.core_type<tc>} {
    %c0 = arith.constant 0 : index
    %c0_0 = arith.constant 0 : index
    %0 = vector.load %arg0[%c0, %c0_0] : memref<5x5xf32, #tpu.memory_space<vmem>>, vector<5x5xf32>
    %c0_1 = arith.constant 0 : index
    %c0_2 = arith.constant 0 : index
    %1 = vector.load %arg1[%c0_1, %c0_2] : memref<5x5xf32, #tpu.memory_space<vmem>>, vector<5x5xf32>
    %cst = arith.constant dense<0.000000e+00> : vector<5x5xf32>
    %2 = tpu.matmul %0, %1, %cst {dimension_numbers = #tpu.dot_dimension_numbers<[1], [0], [0], [1], [0, 0, 1, 1], [], []>} : vector<5x5xf32>, vector<5x5xf32>, vector<5x5xf32> -> vector<5x5xf32>
    %c0_3 = arith.constant 0 : index
    %c0_4 = arith.constant 0 : index
    %c0_5 = arith.constant 0 : index
    %3 = vector.load %arg2[%c0_3, %c0_4, %c0_5] : memref<5x2x5xf32, #tpu.memory_space<vmem>>, vector<5x1x5xf32>
    %4 = vector.shape_cast %3 : vector<5x1x5xf32> to vector<5x5xf32>
    %5 = vector.shape_cast %2 : vector<5x5xf32> to vector<5x1x5xf32>
    tpu.vector_store %arg2[%c0_3, %c0_4, %c0_5], %5 {strides = array<i32>} : memref<5x2x5xf32, #tpu.memory_space<vmem>>, vector<5x1x5xf32>,
    %c0_6 = arith.constant 0 : index
    %c1 = arith.constant 1 : index
    %c0_7 = arith.constant 0 : index
    %6 = vector.load %arg2[%c0_6, %c1, %c0_7] : memref<5x2x5xf32, #tpu.memory_space<vmem>>, vector<5x1x5xf32>
    %7 = vector.shape_cast %6 : vector<5x1x5xf32> to vector<5x5xf32>
    %8 = vector.shape_cast %2 : vector<5x5xf32> to vector<5x1x5xf32>
    tpu.vector_store %arg2[%c0_6, %c1, %c0_7], %8 {strides = array<i32>} : memref<5x2x5xf32, #tpu.memory_space<vmem>>, vector<5x1x5xf32>,
    return
  }
}

</mosaic_0001>

<llo_original>
// kernel: tpu_custom_call.1
$region0: #{tpu_custom_call.1}
  #allocation0 [shape = 'u32[]', space=smem, size = 0x4, offset = 0x4, fixed_abs, tag = 'smem constant byte address 0x4 - core index']
  #allocation1 [shape = 'u32[72,128]{1,0:T(1,128)}', space=vmem, size = 0x9000, scoped, tag = 'internal scratch']
  %s0 = inlined_call_operand.hbm [shape: f32[5,5], index: 0, kind: input, shape index: {}]
  %s1 = inlined_call_operand.hbm [shape: f32[5,5], index: 1, kind: input, shape index: {}]
  %s2 = inlined_call_operand.hbm [shape: f32[5,2,5], index: 2, kind: output, shape index: {}]
  %s3 = sld [smem:[#allocation0]]
  $region26: #{tpu_custom_call.1} parent=0
    _
  %s5 = ssub.s32 1, %s3
  %s6 = scalar_select 0, %s5, %s3
  $region1: #{tpu_custom_call.1} parent=0
    #allocation2 [shape = 'u8[4096]{0}', space=vmem, size = 0x1000, scoped, tag = 'input window, operand 0, single buffered']
    #allocation3 [shape = 's32[1]{0}', space=sflag, size = 0x4, scoped, tag = 'scoped memory for tpu_custom_call.1']
    #allocation4 [shape = 's32[1]{0}', space=sflag, size = 0x4, scoped, tag = 'scoped memory for tpu_custom_call.1']
    #allocation5 [shape = 'u8[4096]{0}', space=vmem, size = 0x1000, scoped, tag = 'input window, operand 1, single buffered']
    #allocation6 [shape = 's32[1]{0}', space=sflag, size = 0x4, scoped, tag = 'scoped memory for tpu_custom_call.1']
    #allocation7 [shape = 'u8[5120]{0}', space=vmem, size = 0x1400, scoped, tag = 'output window, operand 0, single buffered']
    %7 = vsyncpa [#allocation3], 0
    %8 = vsyncpa [#allocation6], 0
    %9 = vsyncpa [#allocation4], 0
    // Predicated region
    $region2: #{tpu_custom_call.1} parent=1 // pred_check
      _
    $region3: #{tpu_custom_call.1} parent=1 // pred_check_branch
      %11 = sbr.rel (0) target = $region5
    $region4: #{tpu_custom_call.1} parent=1 // pred_region
      %13 = vsyncadd [#allocation3], 0
      %s15 = sshll.u32 %s0, 4
      %s16 = int_to_ptr.hbm [resolvable:$true] %s15
      %s17 = sshll.u32 [#allocation2], 4
      %s18 = int_to_ptr.vmem [resolvable:$true] %s17
      %20 = dma.hbm_to_vmem [thread:$0]  %s16, 128, %s18, [#allocation3]
    $region5: #{tpu_custom_call.1} parent=1 // pred_fallthru
      _
    // Predicated region
    $region6: #{tpu_custom_call.1} parent=1 // pred_check
      _
    $region7: #{tpu_custom_call.1} parent=1 // pred_check_branch
      %22 = sbr.rel (0) target = $region9
    $region8: #{tpu_custom_call.1} parent=1 // pred_region
      %24 = vsyncadd [#allocation6], 0
      %s26 = sshll.u32 %s1, 4
      %s27 = int_to_ptr.hbm [resolvable:$true] %s26
      %s28 = sshll.u32 [#allocation5], 4
      %s29 = int_to_ptr.vmem [resolvable:$true] %s28
      %31 = dma.hbm_to_vmem [thread:$0]  %s27, 128, %s29, [#allocation6]
    $region9: #{tpu_custom_call.1} parent=1 // pred_fallthru
      _
    // Predicated region
    $region10: #{tpu_custom_call.1} parent=1 // pred_check
      _
    $region11: #{tpu_custom_call.1} parent=1 // pred_check_branch
      %33 = sbr.rel (0) target = $region13
    $region12: #{tpu_custom_call.1} parent=1 // pred_region
      %35 = dma.done [#allocation3], 128
    $region13: #{tpu_custom_call.1} parent=1 // pred_fallthru
      _
    // Predicated region
    $region14: #{tpu_custom_call.1} parent=1 // pred_check
      _
    $region15: #{tpu_custom_call.1} parent=1 // pred_check_branch
      %37 = sbr.rel (0) target = $region17
    $region16: #{tpu_custom_call.1} parent=1 // pred_region
      %39 = dma.done [#allocation6], 128
    $region17: #{tpu_custom_call.1} parent=1 // pred_fallthru
      _
    %v40 = vld [vmem:[#allocation2] sm:$0x1f]
    %v41 = vld [vmem:[#allocation5] sm:$0x1f]
    %vm42 = vcmask 39936
    %v44 = vsel %vm42, %v40, 0
    %vm46 = vcmask 1044480
    %v48 = vsel %vm46, %v41, 0
    %50 = vmatpush.msra.mxu0 0.0
    %51 = vmatpush.msra.mxu0 0.0
    %52 = vmatpush.msra.mxu0 0.0
    %53 = vmatpush.msra.mxu0 0.0
    %54 = vmatpush.msra.mxu0 0.0
    %55 = vmatpush.msra.mxu0 0.0
    %56 = vmatpush.msra.mxu0 0.0
    %57 = vmatpush.msra.mxu0 0.0
    %58 = vmatpush.msra.mxu0 0.0
    %59 = vmatpush.msra.mxu0 0.0
    %60 = vmatpush.msra.mxu0 0.0
    %61 = vmatpush.msra.mxu0 0.0
    %62 = vmatpush.msra.mxu0 0.0
    %63 = vmatpush.msra.mxu0 0.0
    %64 = vmatpush.msra.mxu0 0.0
    %65 = vmatpush.msra.mxu0 %v48
    %66 = vmatmul.f32.gmra.mxu0 %v44
    %v67 = vpop.f32.mrf.mxu0
    %v68 = vadd.f32 0.0, %v67
    %69 = vdwg.mxu0
    %v71 = vrot.slane %v68, 1
    %v72 = vrot.slane %v68, 2
    %v73 = vrot.slane %v68, 3
    %v74 = vrot.slane %v68, 4
    %vm79 = vcmask 32768
    %80 = vst.msk [vmem:[#allocation7] sm:$0x1] %vm79, %v68
    %81 = vst.msk [vmem:[#allocation7 + $0x2] sm:$0x1] %vm79, %v71
    %82 = vst.msk [vmem:[#allocation7 + $0x4] sm:$0x1] %vm79, %v72
    %83 = vst.msk [vmem:[#allocation7 + $0x6] sm:$0x1] %vm79, %v73
    %84 = vst.msk [vmem:[#allocation7 + $0x8] sm:$0x1] %vm79, %v74
    %85 = vst.msk [vmem:[#allocation7 + $0x1] sm:$0x1] %vm79, %v68
    %86 = vst.msk [vmem:[#allocation7 + $0x3] sm:$0x1] %vm79, %v71
    %87 = vst.msk [vmem:[#allocation7 + $0x5] sm:$0x1] %vm79, %v72
    %88 = vst.msk [vmem:[#allocation7 + $0x7] sm:$0x1] %vm79, %v73
    %89 = vst.msk [vmem:[#allocation7 + $0x9] sm:$0x1] %vm79, %v74
    // Predicated region
    $region18: #{tpu_custom_call.1} parent=1 // pred_check
      _
    $region19: #{tpu_custom_call.1} parent=1 // pred_check_branch
      %91 = sbr.rel (0) target = $region21
    $region20: #{tpu_custom_call.1} parent=1 // pred_region
      %93 = vsyncadd [#allocation4], 0
      %s94 = sshll.u32 [#allocation7], 4
      %s95 = int_to_ptr.vmem [resolvable:$true] %s94
      %s96 = sshll.u32 %s2, 4
      %s97 = int_to_ptr.hbm [resolvable:$true] %s96
      %102 = dma.vmem_to_hbm [thread:$0]  %s95, 160, %s97, [#allocation4], 32, 32, 2
    $region21: #{tpu_custom_call.1} parent=1 // pred_fallthru
      _
    // Predicated region
    $region22: #{tpu_custom_call.1} parent=1 // pred_check
      _
    $region23: #{tpu_custom_call.1} parent=1 // pred_check_branch
      %104 = sbr.rel (0) target = $region25
    $region24: #{tpu_custom_call.1} parent=1 // pred_region
      %106 = dma.done [#allocation4], 160
    $region25: #{tpu_custom_call.1} parent=1 // pred_fallthru
      _
    %107 = vsyncpa [#allocation3], 1
    %108 = vsyncpa [#allocation6], 1
    %109 = vsyncpa [#allocation4], 1

</llo_original>
